<compile_context>
chip_gen: v5e
topology: v5e:2x2
jax: 0.10.0
libtpu: 0.0.40
codegen_flags: <defaults>
</compile_context>

<pallas_src>
import functools

import jax
import jax.numpy as jnp
from jax.experimental import pallas as pl
from jax.experimental.pallas import tpu as pltpu


def mlp_kernel(x_ref, w1_ref, b1_ref, w2_ref, b2_ref, w3_ref, b3_ref, o_ref,
               *, transc_dtype):
    # x_ref: (4, TB) bf16   weights: (out, in) bf16   biases: (out, 1) f32
    # o_ref: (3, TB) out_dtype
    x = x_ref[...]

    # layer 1 + tanh : (10,4) @ (4,TB) -> (10,TB), f32 MXU accumulate
    h = jnp.dot(w1_ref[...], x, preferred_element_type=jnp.float32) + b1_ref[...]
    h = jnp.tanh(h.astype(transc_dtype)).astype(jnp.bfloat16)

    # layer 2 + tanh : (10,10) @ (10,TB) -> (10,TB)
    h = jnp.dot(w2_ref[...], h, preferred_element_type=jnp.float32) + b2_ref[...]
    h = jnp.tanh(h.astype(transc_dtype)).astype(jnp.bfloat16)

    # layer 3 : (3,10) @ (10,TB) -> (3,TB)
    logits = jnp.dot(w3_ref[...], h, preferred_element_type=jnp.float32) + b3_ref[...]

    # softmax over the 3-class (sublane) axis.
    # Per-row max via sublane-slice VPU ops (no XLU lane reduction), then a
    # SINGLE full-tile exp (one EUP pass over all 3 rows), sum via slice adds,
    # and an EUP approx reciprocal instead of a divide.
    m = jnp.maximum(logits[0:1, :], jnp.maximum(logits[1:2, :], logits[2:3, :]))
    e = jnp.exp((logits - m).astype(transc_dtype)).astype(jnp.float32)
    denom = e[0:1, :] + e[1:2, :] + e[2:3, :]
    inv = pl.reciprocal(denom, approx=True)            # EUP slot, ~free
    o_ref[...] = (e * inv).astype(o_ref.dtype)


def _chip_config():
    """Pick transcendental dtype, tile cap and VMEM budget per TPU generation."""
    kind = ""
    try:
        kind = jax.devices()[0].device_kind.lower()
    except Exception:                                   # pragma: no cover
        pass
    if "v7" in kind:                                    # 64 MiB VMEM, 2 TCs
        return jnp.bfloat16, 65536, 48 << 20
    if "v6" in kind:                                    # 128 MiB VMEM, bf16 EUP
        return jnp.bfloat16, 131072, 100 << 20
    if any(g in kind for g in ("v2", "v3", "v4", "v5")):  # no bf16 EUP
        return jnp.float32, 131072, 100 << 20
    # unknown chip: conservative
    return jnp.float32, 65536, 32 << 20


def typo_network_forward_fm(xt, params, *, tile_b=65536, out_dtype=jnp.float32,
                            core_parallel=False):
    """Feature-major entry point (no wrapper relayouts).

    xt: (4, B) float.  Returns (3, B) `out_dtype` softmax probabilities.
    """
    B = xt.shape[1]
    transc_dtype, tb_cap, vmem_cap = _chip_config()

    # Lane-dense batch tile: multiple of 128, capped per chip, shrunk for tiny B.
    tile_b = max(128, tile_b - tile_b % 128)
    tb = min(tile_b, tb_cap, pl.cdiv(B, 128) * 128)
    n_tiles = pl.cdiv(B, tb)
    Bp = n_tiles * tb

    # bf16 at the HBM boundary (memory-bound edges), zero-pad the batch tail.
    xtp = jnp.pad(xt.astype(jnp.bfloat16), ((0, 0), (0, Bp - B)))   # (4, Bp)

    w1 = params["w1"].astype(jnp.bfloat16)              # (10, 4)
    w2 = params["w2"].astype(jnp.bfloat16)              # (10, 10)
    w3 = params["w3"].astype(jnp.bfloat16)              # (3, 10)
    b1 = params["b1"].astype(jnp.float32).reshape(10, 1)
    b2 = params["b2"].astype(jnp.float32).reshape(10, 1)
    b3 = params["b3"].astype(jnp.float32).reshape(3, 1)

    out_itemsize = jnp.dtype(out_dtype).itemsize
    cost = pl.CostEstimate(
        flops=340 * Bp,                                  # 2*(40+100+30) per column
        transcendentals=23 * Bp,                         # 20 tanh + 3 exp
        bytes_accessed=(4 * 2 + 3 * out_itemsize) * Bp
        + (10 * 4 + 10 * 10 + 3 * 10) * 2 + (10 + 10 + 3) * 4,
    )

    # Per-step VMEM (double-buffered padded I/O + f32 temps) is roughly 200*tb
    # bytes; give the compiler headroom but stay under the chip's physical VMEM.
    vmem_limit = int(min(vmem_cap, max(32 << 20, 512 * tb)))
    dim_sem = (pltpu.CORE_PARALLEL,) if core_parallel else ("parallel",)

    const = lambda i: (0, 0)   # weights/biases: same (VMEM-resident) block each step
    out = pl.pallas_call(
        functools.partial(mlp_kernel, transc_dtype=transc_dtype),
        out_shape=jax.ShapeDtypeStruct((3, Bp), out_dtype),
        grid=(n_tiles,),
        in_specs=[
            pl.BlockSpec((4, tb), lambda i: (0, i)),    # x tile (lane-dense batch)
            pl.BlockSpec((10, 4), const),               # w1
            pl.BlockSpec((10, 1), const),               # b1
            pl.BlockSpec((10, 10), const),              # w2
            pl.BlockSpec((10, 1), const),               # b2
            pl.BlockSpec((3, 10), const),               # w3
            pl.BlockSpec((3, 1), const),                # b3
        ],
        out_specs=pl.BlockSpec((3, tb), lambda i: (0, i)),
        compiler_params=pltpu.CompilerParams(
            dimension_semantics=dim_sem,
            vmem_limit_bytes=vmem_limit,
        ),
        cost_estimate=cost,
    )(xtp, w1, b1, w2, b2, w3, b3)

    return out[:, :B]                                    # (3, B)


def typo_network_forward(x, params, *, tile_b=65536, out_dtype=jnp.float32,
                         core_parallel=False):
    """PyTorch-layout entry: x (B, 4) float32 -> (B, 3) softmax probabilities.

    Incurs one input and one output transpose; callers that can consume the
    feature-major (3, B) layout should use `typo_network_forward_fm` directly.
    """
    out = typo_network_forward_fm(x.T, params, tile_b=tile_b,
                                  out_dtype=out_dtype, core_parallel=core_parallel)
    return out.T                                         # (B, 3)


def init_params(key):
    """nn.Linear-style init: weight (out, in), bias (out,), uniform(+-1/sqrt(fan_in))."""
    ks = jax.random.split(key, 6)

    def linear(kw, kb, fan_in, fan_out):
        bound = 1.0 / jnp.sqrt(float(fan_in))
        w = jax.random.uniform(kw, (fan_out, fan_in), jnp.float32, -bound, bound)
        b = jax.random.uniform(kb, (fan_out,), jnp.float32, -bound, bound)
        return w, b

    w1, b1 = linear(ks[0], ks[1], 4, 10)
    w2, b2 = linear(ks[2], ks[3], 10, 10)
    w3, b3 = linear(ks[4], ks[5], 10, 3)
    return {"w1": w1, "b1": b1, "w2": w2, "b2": b2, "w3": w3, "b3": b3}


def reference_forward(x, params):
    """Plain-JAX reference with the same bf16 rounding of x / weights."""
    xb = x.astype(jnp.bfloat16).astype(jnp.float32)
    w1 = params["w1"].astype(jnp.bfloat16).astype(jnp.float32)
    w2 = params["w2"].astype(jnp.bfloat16).astype(jnp.float32)
    w3 = params["w3"].astype(jnp.bfloat16).astype(jnp.float32)
    h = jnp.tanh(xb @ w1.T + params["b1"])
    h = jnp.tanh(h @ w2.T + params["b2"])
    logits = h @ w3.T + params["b3"]
    return jax.nn.softmax(logits, axis=-1)


if __name__ == "__main__":
    key = jax.random.PRNGKey(0)
    k_param, k_x1, k_x2 = jax.random.split(key, 3)

    params = init_params(k_param)
    fwd = jax.jit(typo_network_forward)

    # small demo batch (8 iris rows, 4 features)
    x = jax.random.normal(k_x1, (8, 4), dtype=jnp.float32)
    out = jax.block_until_ready(fwd(x, params))
    ref = reference_forward(x, params)

    assert out.shape == (8, 3)
    # approx reciprocal + (bf16 transcendentals on v6e/v7x) -> loose tolerances
    assert bool(jnp.all(jnp.abs(jnp.sum(out, axis=-1) - 1.0) < 2e-2))
    assert bool(jnp.all(jnp.abs(out - ref) < 3e-2))

    # exercise padding + a multi-tile parallel grid (3 tiles of 128 rows)
    x2 = jax.random.normal(k_x2, (300, 4), dtype=jnp.float32)
    out2 = jax.block_until_ready(
        jax.jit(lambda a, p: typo_network_forward(a, p, tile_b=128))(x2, params))
    ref2 = reference_forward(x2, params)
    assert out2.shape == (300, 3)
    assert bool(jnp.all(jnp.abs(jnp.sum(out2, axis=-1) - 1.0) < 2e-2))
    assert bool(jnp.all(jnp.abs(out2 - ref2) < 3e-2))

    print("KERNEL_OK")
</pallas_src>

<mosaic_0001>
module attributes {stable_mosaic.version = 11 : i64} {
  func.func @mlp_kernel(%arg0: i32, %arg1: memref<4x128xbf16, #tpu.memory_space<vmem>>, %arg2: memref<10x4xbf16, #tpu.memory_space<vmem>>, %arg3: memref<10x1xf32, #tpu.memory_space<vmem>>, %arg4: memref<10x10xbf16, #tpu.memory_space<vmem>>, %arg5: memref<10x1xf32, #tpu.memory_space<vmem>>, %arg6: memref<3x10xbf16, #tpu.memory_space<vmem>>, %arg7: memref<3x1xf32, #tpu.memory_space<vmem>>, %arg8: memref<3x128xf32, #tpu.memory_space<vmem>>) attributes {dimension_semantics = [#tpu.dimension_semantics<parallel>], iteration_bounds = array<i64: 1>, scalar_prefetch = 0 : i64, scratch_operands = 0 : i64, tpu.core_type = #tpu.core_type<tc>, window_params = [{transform_indices = @transform_0, window_bounds = array<i64: 4, 128>}, {pipeline_mode = #tpu.pipeline_mode<synchronous>, transform_indices = @transform_1, window_bounds = array<i64: 10, 4>}, {pipeline_mode = #tpu.pipeline_mode<synchronous>, transform_indices = @transform_2, window_bounds = array<i64: 10, 1>}, {pipeline_mode = #tpu.pipeline_mode<synchronous>, transform_indices = @transform_3, window_bounds = array<i64: 10, 10>}, {pipeline_mode = #tpu.pipeline_mode<synchronous>, transform_indices = @transform_4, window_bounds = array<i64: 10, 1>}, {pipeline_mode = #tpu.pipeline_mode<synchronous>, transform_indices = @transform_5, window_bounds = array<i64: 3, 10>}, {pipeline_mode = #tpu.pipeline_mode<synchronous>, transform_indices = @transform_6, window_bounds = array<i64: 3, 1>}, {transform_indices = @transform_7, window_bounds = array<i64: 3, 128>}]} {
    %c0 = arith.constant 0 : index
    %c0_0 = arith.constant 0 : index
    %0 = vector.load %arg1[%c0, %c0_0] : memref<4x128xbf16, #tpu.memory_space<vmem>>, vector<4x128xbf16>
    %c0_1 = arith.constant 0 : index
    %c0_2 = arith.constant 0 : index
    %1 = vector.load %arg2[%c0_1, %c0_2] : memref<10x4xbf16, #tpu.memory_space<vmem>>, vector<10x4xbf16>
    %cst = arith.constant dense<0.000000e+00> : vector<10x128xf32>
    %2 = tpu.matmul %1, %0, %cst {dimension_numbers = #tpu.dot_dimension_numbers<[1], [0], [0], [1], [0, 0, 1, 1], [], []>} : vector<10x4xbf16>, vector<4x128xbf16>, vector<10x128xf32> -> vector<10x128xf32>
    %c0_3 = arith.constant 0 : index
    %c0_4 = arith.constant 0 : index
    %3 = vector.load %arg3[%c0_3, %c0_4] : memref<10x1xf32, #tpu.memory_space<vmem>>, vector<10x1xf32>
    %4 = vector.broadcast %3 : vector<10x1xf32> to vector<10x128xf32>
    %5 = arith.addf %2, %4 : vector<10x128xf32>
    %6 = math.tanh %5 : vector<10x128xf32>
    %7 = arith.truncf %6 : vector<10x128xf32> to vector<10x128xbf16>
    %c0_5 = arith.constant 0 : index
    %c0_6 = arith.constant 0 : index
    %8 = vector.load %arg4[%c0_5, %c0_6] : memref<10x10xbf16, #tpu.memory_space<vmem>>, vector<10x10xbf16>
    %cst_7 = arith.constant dense<0.000000e+00> : vector<10x128xf32>
    %9 = tpu.matmul %8, %7, %cst_7 {dimension_numbers = #tpu.dot_dimension_numbers<[1], [0], [0], [1], [0, 0, 1, 1], [], []>} : vector<10x10xbf16>, vector<10x128xbf16>, vector<10x128xf32> -> vector<10x128xf32>
    %c0_8 = arith.constant 0 : index
    %c0_9 = arith.constant 0 : index
    %10 = vector.load %arg5[%c0_8, %c0_9] : memref<10x1xf32, #tpu.memory_space<vmem>>, vector<10x1xf32>
    %11 = vector.broadcast %10 : vector<10x1xf32> to vector<10x128xf32>
    %12 = arith.addf %9, %11 : vector<10x128xf32>
    %13 = math.tanh %12 : vector<10x128xf32>
    %14 = arith.truncf %13 : vector<10x128xf32> to vector<10x128xbf16>
    %c0_10 = arith.constant 0 : index
    %c0_11 = arith.constant 0 : index
    %15 = vector.load %arg6[%c0_10, %c0_11] : memref<3x10xbf16, #tpu.memory_space<vmem>>, vector<3x10xbf16>
    %cst_12 = arith.constant dense<0.000000e+00> : vector<3x128xf32>
    %16 = tpu.matmul %15, %14, %cst_12 {dimension_numbers = #tpu.dot_dimension_numbers<[1], [0], [0], [1], [0, 0, 1, 1], [], []>} : vector<3x10xbf16>, vector<10x128xbf16>, vector<3x128xf32> -> vector<3x128xf32>
    %c0_13 = arith.constant 0 : index
    %c0_14 = arith.constant 0 : index
    %17 = vector.load %arg7[%c0_13, %c0_14] : memref<3x1xf32, #tpu.memory_space<vmem>>, vector<3x1xf32>
    %18 = vector.broadcast %17 : vector<3x1xf32> to vector<3x128xf32>
    %19 = arith.addf %16, %18 : vector<3x128xf32>
    %20 = vector.extract_strided_slice %19 {offsets = [0, 0], sizes = [1, 128], strides = [1, 1]} : vector<3x128xf32> to vector<1x128xf32>
    %21 = vector.extract_strided_slice %19 {offsets = [1, 0], sizes = [1, 128], strides = [1, 1]} : vector<3x128xf32> to vector<1x128xf32>
    %22 = vector.extract_strided_slice %19 {offsets = [2, 0], sizes = [1, 128], strides = [1, 1]} : vector<3x128xf32> to vector<1x128xf32>
    %23 = arith.maximumf %21, %22 : vector<1x128xf32>
    %24 = arith.maximumf %20, %23 : vector<1x128xf32>
    %25 = vector.broadcast %24 : vector<1x128xf32> to vector<3x128xf32>
    %26 = arith.subf %19, %25 : vector<3x128xf32>
    %27 = math.exp %26 : vector<3x128xf32>
    %28 = vector.extract_strided_slice %27 {offsets = [0, 0], sizes = [1, 128], strides = [1, 1]} : vector<3x128xf32> to vector<1x128xf32>
    %29 = vector.extract_strided_slice %27 {offsets = [1, 0], sizes = [1, 128], strides = [1, 1]} : vector<3x128xf32> to vector<1x128xf32>
    %30 = arith.addf %28, %29 : vector<1x128xf32>
    %31 = vector.extract_strided_slice %27 {offsets = [2, 0], sizes = [1, 128], strides = [1, 1]} : vector<3x128xf32> to vector<1x128xf32>
    %32 = arith.addf %30, %31 : vector<1x128xf32>
    %33 = tpu.reciprocal %32 {approx = true} : vector<1x128xf32> -> vector<1x128xf32>
    %34 = vector.broadcast %33 : vector<1x128xf32> to vector<3x128xf32>
    %35 = arith.mulf %27, %34 : vector<3x128xf32>
    %c0_15 = arith.constant 0 : index
    %c0_16 = arith.constant 0 : index
    %36 = vector.load %arg8[%c0_15, %c0_16] : memref<3x128xf32, #tpu.memory_space<vmem>>, vector<3x128xf32>
    tpu.vector_store %arg8[%c0_15, %c0_16], %35 {strides = array<i32>} : memref<3x128xf32, #tpu.memory_space<vmem>>, vector<3x128xf32>,
    return
  }
  func.func @transform_0(%arg0: i32) -> (i32, i32) {
    %c0_i32 = arith.constant 0 : i32
    %c0_i32_0 = arith.constant 0 : i32
    return %c0_i32, %arg0 : i32, i32
  }
  func.func @transform_1(%arg0: i32) -> (i32, i32) {
    %c0_i32 = arith.constant 0 : i32
    %c0_i32_0 = arith.constant 0 : i32
    %c0_i32_1 = arith.constant 0 : i32
    return %c0_i32, %c0_i32_0 : i32, i32
  }
  func.func @transform_2(%arg0: i32) -> (i32, i32) {
    %c0_i32 = arith.constant 0 : i32
    %c0_i32_0 = arith.constant 0 : i32
    %c0_i32_1 = arith.constant 0 : i32
    return %c0_i32, %c0_i32_0 : i32, i32
  }
  func.func @transform_3(%arg0: i32) -> (i32, i32) {
    %c0_i32 = arith.constant 0 : i32
    %c0_i32_0 = arith.constant 0 : i32
    %c0_i32_1 = arith.constant 0 : i32
    return %c0_i32, %c0_i32_0 : i32, i32
  }
  func.func @transform_4(%arg0: i32) -> (i32, i32) {
    %c0_i32 = arith.constant 0 : i32
    %c0_i32_0 = arith.constant 0 : i32
    %c0_i32_1 = arith.constant 0 : i32
    return %c0_i32, %c0_i32_0 : i32, i32
  }
  func.func @transform_5(%arg0: i32) -> (i32, i32) {
    %c0_i32 = arith.constant 0 : i32
    %c0_i32_0 = arith.constant 0 : i32
    %c0_i32_1 = arith.constant 0 : i32
    return %c0_i32, %c0_i32_0 : i32, i32
  }
  func.func @transform_6(%arg0: i32) -> (i32, i32) {
    %c0_i32 = arith.constant 0 : i32
    %c0_i32_0 = arith.constant 0 : i32
    %c0_i32_1 = arith.constant 0 : i32
    return %c0_i32, %c0_i32_0 : i32, i32
  }
  func.func @transform_7(%arg0: i32) -> (i32, i32) {
    %c0_i32 = arith.constant 0 : i32
    %c0_i32_0 = arith.constant 0 : i32
    return %c0_i32, %arg0 : i32, i32
  }
}

</mosaic_0001>

<llo_original>
// kernel: typo_network_forward.1
$region0: #{typo_network_forward.1}
  #allocation0 [shape = 'u32[]', space=smem, size = 0x4, offset = 0x4, fixed_abs, tag = 'smem constant byte address 0x4 - core index']
  #allocation1 [shape = 'u32[72,128]{1,0:T(1,128)}', space=vmem, size = 0x9000, scoped, tag = 'internal scratch']
  %s0 = inlined_call_operand.vmem [shape: bf16[4,128], index: 0, kind: input, shape index: {}]
  %s1 = inlined_call_operand.vmem [shape: bf16[10,4], index: 1, kind: input, shape index: {}]
  %s2 = inlined_call_operand.vmem [shape: f32[10,1], index: 2, kind: input, shape index: {}]
  %s3 = inlined_call_operand.vmem [shape: bf16[10,10], index: 3, kind: input, shape index: {}]
  %s4 = inlined_call_operand.vmem [shape: f32[10,1], index: 4, kind: input, shape index: {}]
  %s5 = inlined_call_operand.vmem [shape: bf16[3,10], index: 5, kind: input, shape index: {}]
  %s6 = inlined_call_operand.vmem [shape: f32[3,1], index: 6, kind: input, shape index: {}]
  %s7 = inlined_call_operand.vmem [shape: f32[3,128], index: 7, kind: output, shape index: {}]
  %s8 = sld [smem:[#allocation0]]
  $region38: #{typo_network_forward.1} parent=0
    _
  %s10 = ssub.s32 1, %s8
  %s11 = scalar_select 0, %s10, %s8
  // Predicated region
  $region2: #{typo_network_forward.1} parent=0 // pred_check
    _
  $region3: #{typo_network_forward.1} parent=0 // pred_check_branch
    %13 = sbr.rel (0) target = $region5
  $region4: #{typo_network_forward.1} parent=0 // pred_region
    _
  $region5: #{typo_network_forward.1} parent=0 // pred_fallthru
    _
  // Predicated region
  $region6: #{typo_network_forward.1} parent=0 // pred_check
    _
  $region7: #{typo_network_forward.1} parent=0 // pred_check_branch
    %15 = sbr.rel (0) target = $region9
  $region8: #{typo_network_forward.1} parent=0 // pred_region
    _
  $region9: #{typo_network_forward.1} parent=0 // pred_fallthru
    _
  // Predicated region
  $region10: #{typo_network_forward.1} parent=0 // pred_check
    _
  $region11: #{typo_network_forward.1} parent=0 // pred_check_branch
    %17 = sbr.rel (0) target = $region13
  $region12: #{typo_network_forward.1} parent=0 // pred_region
    _
  $region13: #{typo_network_forward.1} parent=0 // pred_fallthru
    _
  // Predicated region
  $region14: #{typo_network_forward.1} parent=0 // pred_check
    _
  $region15: #{typo_network_forward.1} parent=0 // pred_check_branch
    %19 = sbr.rel (0) target = $region17
  $region16: #{typo_network_forward.1} parent=0 // pred_region
    _
  $region17: #{typo_network_forward.1} parent=0 // pred_fallthru
    _
  // Predicated region
  $region18: #{typo_network_forward.1} parent=0 // pred_check
    _
  $region19: #{typo_network_forward.1} parent=0 // pred_check_branch
    %21 = sbr.rel (0) target = $region21
  $region20: #{typo_network_forward.1} parent=0 // pred_region
    _
  $region21: #{typo_network_forward.1} parent=0 // pred_fallthru
    _
  // Predicated region
  $region22: #{typo_network_forward.1} parent=0 // pred_check
    _
  $region23: #{typo_network_forward.1} parent=0 // pred_check_branch
    %23 = sbr.rel (0) target = $region25
  $region24: #{typo_network_forward.1} parent=0 // pred_region
    _
  $region25: #{typo_network_forward.1} parent=0 // pred_fallthru
    _
  // Predicated region
  $region26: #{typo_network_forward.1} parent=0 // pred_check
    _
  $region27: #{typo_network_forward.1} parent=0 // pred_check_branch
    %25 = sbr.rel (0) target = $region29
  $region28: #{typo_network_forward.1} parent=0 // pred_region
    _
  $region29: #{typo_network_forward.1} parent=0 // pred_fallthru
    _
  %v27 = vld [vmem:[%s0] sm:$0x3]
  %v28 = vld [vmem:[%s1] sm:$0xf]
  %v29 = vld [vmem:[%s1 + $0x4] sm:$0x1]
  %v30 = vld [vmem:[%s2] sm:$0xff]
  %v31 = vld [vmem:[%s2 + $0x8] sm:$0x3]
  %33 = vset.pattern.permute.xlu0 0
  %34 = vperm.xlu0 %33, %v30
  %v35 = vpop.permute.xlu0 %34
  %38 = vset.pattern.permute.xlu0 0
  %39 = vperm.xlu0 %38, %v31
  %v40 = vpop.permute.xlu0 %39
  %v44 = vunpack.c.l.b16 %v28
  %v45 = vunpack.c.l.b16 %v29
  %v46 = vpack.c.b16 %v45, %v44
  %vm47 = vcmask 31744
  %v49 = vsel %vm47, %v46, 0
  %vm51 = vcmask 1041408
  %v53 = vsel %vm51, %v27, 0
  %55 = vmatpush.bf16.msra.mxu0 0
  %56 = vmatpush.bf16.msra.mxu0 0
  %57 = vmatpush.bf16.msra.mxu0 0
  %58 = vmatpush.bf16.msra.mxu0 0
  %59 = vmatpush.bf16.msra.mxu0 0
  %60 = vmatpush.bf16.msra.mxu0 0
  %61 = vmatpush.bf16.msra.mxu0 0
  %62 = vmatpush.bf16.msra.mxu0 %v53
  %63 = vmatmul.bf16.gmra.mxu0 %v49
  %v64 = vpop.f32.mrf.mxu0
  %v65 = vadd.f32 %v35, %v64
  %v66 = vpop.f32.mrf.mxu0
  %v67 = vadd.f32 %v40, %v66
  %68 = vdwg.mxu0
  %v69 = vtanh.pop %v65
  %v70 = vtanh.pop %v67
  %v71 = vpack.c.bf16 %v70, %v69
  %v72 = vld [vmem:[%s3] sm:$0xf]
  %v73 = vld [vmem:[%s3 + $0x4] sm:$0x1]
  %v74 = vld [vmem:[%s4] sm:$0xff]
  %v75 = vld [vmem:[%s4 + $0x8] sm:$0x3]
  %77 = vset.pattern.permute.xlu0 0
  %78 = vperm.xlu0 %77, %v74
  %v79 = vpop.permute.xlu0 %78
  %82 = vset.pattern.permute.xlu0 0
  %83 = vperm.xlu0 %82, %v75
  %v84 = vpop.permute.xlu0 %83
  %v88 = vunpack.c.l.b16 %v72
  %v89 = vunpack.c.l.b16 %v73
  %v90 = vpack.c.b16 %v89, %v88
  %vm91 = vcmask 80896
  %v93 = vsel %vm91, %v90, 0
  %vm95 = vcmask 1044480
  %v97 = vsel %vm95, %v71, 0
  %99 = vmatpush.bf16.msra.mxu0 0
  %100 = vmatpush.bf16.msra.mxu0 0
  %101 = vmatpush.bf16.msra.mxu0 0
  %102 = vmatpush.bf16.msra.mxu0 0
  %103 = vmatpush.bf16.msra.mxu0 0
  %104 = vmatpush.bf16.msra.mxu0 0
  %105 = vmatpush.bf16.msra.mxu0 0
  %106 = vmatpush.bf16.msra.mxu0 %v97
  %107 = vmatmul.bf16.gmra.mxu0 %v93
  %v108 = vpop.f32.mrf.mxu0
  %v109 = vadd.f32 %v79, %v108
  %v110 = vpop.f32.mrf.mxu0
  %v111 = vadd.f32 %v84, %v110
  %112 = vdwg.mxu0
  %v113 = vtanh.pop %v109
  %v114 = vtanh.pop %v111
  %v115 = vpack.c.bf16 %v114, %v113
  %v116 = vld [vmem:[%s5] sm:$0x3]
  %v117 = vld [vmem:[%s6] sm:$0x7]
  %119 = vset.pattern.permute.xlu0 0
  %120 = vperm.xlu0 %119, %v117
  %v121 = vpop.permute.xlu0 %120
  %v124 = vsel %vm91, %v116, 0
  %v127 = vsel %vm95, %v115, 0
  %129 = vmatpush.bf16.msra.mxu0 0
  %130 = vmatpush.bf16.msra.mxu0 0
  %131 = vmatpush.bf16.msra.mxu0 0
  %132 = vmatpush.bf16.msra.mxu0 0
  %133 = vmatpush.bf16.msra.mxu0 0
  %134 = vmatpush.bf16.msra.mxu0 0
  %135 = vmatpush.bf16.msra.mxu0 0
  %136 = vmatpush.bf16.msra.mxu0 %v127
  %137 = vmatmul.bf16.gmra.mxu0 %v124
  %v138 = vpop.f32.mrf.mxu0
  %v139 = vadd.f32 %v121, %v138
  %v140 = vpop.f32.mrf.mxu0
  %141 = vdwg.mxu0
  %v143 = vrot.slane %v139, 1
  %v145 = vmax.f32 %v139, %v143
  %v147 = vrot.slane %v145, 1
  %v149 = vmax.f32 %v139, %v147
  %v150 = vperm.slane %v149, 0
  %v151 = vsub.f32 %v139, %v150
  %v152 = vmul.f32 %v151, 1.442695
  %v153 = vpow.pop %v152
  %v155 = vrot.slane %v153, 1
  %v157 = vadd.f32 %v153, %v155
  %v158 = vrot.slane %v153, 2
  %v160 = vadd.f32 %v157, %v158
  %v161 = vrcp.pop %v160
  %v162 = vperm.slane %v161, 0
  %v163 = vmul.f32 %v153, %v162
  %164 = vst [vmem:[%s7] sm:$0x7] %v163
  // Predicated region
  $region30: #{typo_network_forward.1} parent=0 // pred_check
    _
  $region31: #{typo_network_forward.1} parent=0 // pred_check_branch
    %166 = sbr.rel (0) target = $region33
  $region32: #{typo_network_forward.1} parent=0 // pred_region
    _
  $region33: #{typo_network_forward.1} parent=0 // pred_fallthru
    _
  // Predicated region
  $region34: #{typo_network_forward.1} parent=0 // pred_check
    _
  $region35: #{typo_network_forward.1} parent=0 // pred_check_branch
    %168 = sbr.rel (0) target = $region37
  $region36: #{typo_network_forward.1} parent=0 // pred_region
    _
  $region37: #{typo_network_forward.1} parent=0 // pred_fallthru
    _

</llo_original>
